<compile_context>
chip_gen: v7x
topology: tpu7x:2x2x1
jax: 0.10.0
libtpu: 0.0.40
codegen_flags: <defaults>
</compile_context>

<pallas_src>
import functools

import jax
import jax.numpy as jnp
from jax import lax
from jax.experimental import pallas as pl
from jax.experimental.pallas import tpu as pltpu

LN_EPS = 1e-5

_ROW_ALIGN = 32                         # sublane-safe row alignment (f32/bf16/int8)
_TARGET_BLOCK_BYTES = 8 * 1024 * 1024   # per-input-block DMA size target
_F32_TEMP_BYTES = 16                    # ~4 live f32 in-kernel temporaries per element


def _round_up(x, m):
    return ((x + m - 1) // m) * m


def _tpu_vmem_and_cores():
    """(physical VMEM bytes, TensorCores per chip), conservative fallback."""
    try:
        vmem = int(pltpu.get_tpu_info().vmem_capacity_bytes)
    except Exception:
        vmem = 64 * 1024 * 1024  # assume v7x-class if we cannot query
    # Heuristic: 64 MiB VMEM per core -> v7x-class (2 TCs); 128 MiB -> v5e/v6e (1 TC).
    cores = 2 if vmem <= 80 * 1024 * 1024 else 1
    return vmem, cores


def _choose_tile_rows(m, h, itemsize, vmem_budget, num_cores):
    """Largest aligned row tile whose footprint (6 double-buffered I/O blocks +
    f32 temporaries) fits the VMEM budget, capped at a DMA-friendly block size."""
    per_row_vmem = h * (6 * itemsize + _F32_TEMP_BYTES)
    fit = int(vmem_budget // per_row_vmem)
    fit = max(_ROW_ALIGN, (fit // _ROW_ALIGN) * _ROW_ALIGN)

    target = int(_TARGET_BLOCK_BYTES // max(1, h * itemsize))
    target = max(_ROW_ALIGN, (target // _ROW_ALIGN) * _ROW_ALIGN)

    tile = min(fit, target)

    if tile >= m:
        if num_cores >= 2 and m >= 2 * _ROW_ALIGN:
            # Split so both TensorCores get work (v7x megacore).
            tile = min(fit, _round_up(pl.cdiv(m, num_cores), _ROW_ALIGN))
        else:
            # Single full-extent block (legal for any m, no wasted split on 1-TC chips).
            tile = m
    elif num_cores >= 2:
        grid = pl.cdiv(m, tile)
        if grid % num_cores:
            # Best effort: nudge the tile so the grid is a multiple of the TC count.
            grid2 = _round_up(grid, num_cores)
            tile2 = _round_up(pl.cdiv(m, grid2), _ROW_ALIGN)
            if 0 < tile2 <= fit and pl.cdiv(m, tile2) % num_cores == 0:
                tile = tile2
    return tile


def _make_addnorm_kernel(h):
    inv_h = 1.0 / float(h)

    def kernel(x_ref, y_ref, g_ref, b_ref, o_ref):
        # z = dropout(Y) + X   (dropout_prob = 0.0 -> identity)
        # TODO(synk): stochastic dropout (p > 0, training mode) would need
        # pltpu.prng_seed / prng_random_bits; not part of the default forward.
        z = (y_ref[...] + x_ref[...]).astype(jnp.float32)
        # Two-pass mean/var: numerically stable, matches PyTorch's biased variance.
        mean = jnp.sum(z, axis=-1, keepdims=True) * inv_h
        centered = z - mean
        var = jnp.sum(centered * centered, axis=-1, keepdims=True) * inv_h
        inv = lax.rsqrt(var + LN_EPS)
        o_ref[...] = (centered * inv * g_ref[...] + b_ref[...]).astype(o_ref.dtype)

    return kernel


@functools.partial(jax.jit, static_argnames=("tile_rows",))
def block_add_norm(x, y, gamma, beta, *, tile_rows=None):
    """x, y: (..., hidden); gamma, beta: (hidden,)."""
    assert x.shape == y.shape
    orig_shape = x.shape
    h = orig_shape[-1]
    m = 1
    for d in orig_shape[:-1]:
        m *= d

    itemsize = jnp.dtype(x.dtype).itemsize
    vmem_phys, num_cores = _tpu_vmem_and_cores()
    vmem_budget = (vmem_phys * 3) // 4      # ~48 MiB on v7x, ~96 MiB on v5e/v6e

    if tile_rows is None:
        tile_rows = _choose_tile_rows(m, h, itemsize, vmem_budget, num_cores)
    if tile_rows >= m:
        tile_rows = m                       # full-extent block: legal for any m
    else:
        tile_rows = _round_up(max(8, tile_rows), 8)
        if tile_rows >= m:
            tile_rows = m

    grid = pl.cdiv(m, tile_rows)            # ragged last block handled by Pallas

    # TODO(synk): extremely large hidden dims (f32 h ~> 100K) would need a
    # hidden-dim split + two-pass LayerNorm to fit v7x's 64 MiB VMEM.

    x2 = x.reshape(m, h)
    y2 = y.reshape(m, h)
    g2 = gamma.reshape(1, h).astype(jnp.float32)
    b2 = beta.reshape(1, h).astype(jnp.float32)

    row_spec = pl.BlockSpec((tile_rows, h), lambda i: (i, 0))
    vec_spec = pl.BlockSpec((1, h), lambda i: (0, 0))

    # Scoped VMEM grant: double-buffered I/O blocks + f32 temporaries + margin,
    # clamped below the chip's physical VMEM.
    footprint = tile_rows * h * (6 * itemsize + _F32_TEMP_BYTES) + 4 * h * 4
    vmem_limit = int(min((vmem_phys * 9) // 10,
                         max(32 * 1024 * 1024, footprint + 8 * 1024 * 1024)))

    out2 = pl.pallas_call(
        _make_addnorm_kernel(h),
        out_shape=jax.ShapeDtypeStruct((m, h), x.dtype),
        grid_spec=pltpu.PrefetchScalarGridSpec(
            num_scalar_prefetch=0,
            grid=(grid,),
            in_specs=[row_spec, row_spec, vec_spec, vec_spec],
            out_specs=row_spec,
        ),
        compiler_params=pltpu.CompilerParams(
            dimension_semantics=("parallel",),
            vmem_limit_bytes=vmem_limit,
        ),
    )(x2, y2, g2, b2)

    return out2.reshape(orig_shape)


def _reference(x, y, gamma, beta):
    z = (y + x).astype(jnp.float32)
    mean = jnp.mean(z, axis=-1, keepdims=True)
    var = jnp.mean((z - mean) ** 2, axis=-1, keepdims=True)
    normed = (z - mean) * lax.rsqrt(var + LN_EPS)
    return (normed * gamma + beta).astype(x.dtype)


if __name__ == "__main__":
    batch, seq, hidden = 2, 8, 32  # LayerNorm(shape=hidden)

    key = jax.random.PRNGKey(0)
    kx, ky = jax.random.split(key)
    x = jax.random.normal(kx, (batch, seq, hidden), dtype=jnp.float32)
    y = jax.random.normal(ky, (batch, seq, hidden), dtype=jnp.float32)

    # Deterministic, non-trivial LayerNorm parameters
    # (PyTorch default would be gamma=1, beta=0).
    gamma = 1.0 + 0.01 * jnp.arange(hidden, dtype=jnp.float32)
    beta = 0.02 * jnp.arange(hidden, dtype=jnp.float32)

    out = jax.block_until_ready(block_add_norm(x, y, gamma, beta))

    ref = _reference(x, y, gamma, beta)
    assert out.shape == (batch, seq, hidden)
    assert jnp.allclose(out, ref, atol=1e-5, rtol=1e-5)

    print("KERNEL_OK")
</pallas_src>

<mosaic_0001>
module attributes {stable_mosaic.version = 11 : i64} {
  func.func @kernel(%arg0: i32, %arg1: memref<16x32xf32, #tpu.memory_space<vmem>>, %arg2: memref<16x32xf32, #tpu.memory_space<vmem>>, %arg3: memref<1x32xf32, #tpu.memory_space<vmem>>, %arg4: memref<1x32xf32, #tpu.memory_space<vmem>>, %arg5: memref<16x32xf32, #tpu.memory_space<vmem>>) attributes {dimension_semantics = [#tpu.dimension_semantics<parallel>], iteration_bounds = array<i64: 1>, scalar_prefetch = 0 : i64, scratch_operands = 0 : i64, tpu.core_type = #tpu.core_type<tc>, window_params = [{transform_indices = @transform_0, window_bounds = array<i64: 16, 32>}, {transform_indices = @transform_1, window_bounds = array<i64: 16, 32>}, {pipeline_mode = #tpu.pipeline_mode<synchronous>, transform_indices = @transform_2, window_bounds = array<i64: 1, 32>}, {pipeline_mode = #tpu.pipeline_mode<synchronous>, transform_indices = @transform_3, window_bounds = array<i64: 1, 32>}, {transform_indices = @transform_4, window_bounds = array<i64: 16, 32>}]} {
    %c0 = arith.constant 0 : index
    %c0_0 = arith.constant 0 : index
    %0 = vector.load %arg2[%c0, %c0_0] : memref<16x32xf32, #tpu.memory_space<vmem>>, vector<16x32xf32>
    %c0_1 = arith.constant 0 : index
    %c0_2 = arith.constant 0 : index
    %1 = vector.load %arg1[%c0_1, %c0_2] : memref<16x32xf32, #tpu.memory_space<vmem>>, vector<16x32xf32>
    %2 = arith.addf %0, %1 : vector<16x32xf32>
    %cst = arith.constant dense<0.000000e+00> : vector<16xf32>
    %3 = vector.multi_reduction <add>, %2, %cst [1] : vector<16x32xf32> to vector<16xf32>
    %4 = vector.shape_cast %3 : vector<16xf32> to vector<16x1xf32>
    %cst_3 = arith.constant 3.125000e-02 : f32
    %5 = vector.broadcast %cst_3 : f32 to vector<16x1xf32>
    %6 = arith.mulf %4, %5 : vector<16x1xf32>
    %7 = vector.broadcast %6 : vector<16x1xf32> to vector<16x32xf32>
    %8 = arith.subf %2, %7 : vector<16x32xf32>
    %9 = arith.mulf %8, %8 : vector<16x32xf32>
    %cst_4 = arith.constant dense<0.000000e+00> : vector<16xf32>
    %10 = vector.multi_reduction <add>, %9, %cst_4 [1] : vector<16x32xf32> to vector<16xf32>
    %11 = vector.shape_cast %10 : vector<16xf32> to vector<16x1xf32>
    %cst_5 = arith.constant 3.125000e-02 : f32
    %12 = vector.broadcast %cst_5 : f32 to vector<16x1xf32>
    %13 = arith.mulf %11, %12 : vector<16x1xf32>
    %cst_6 = arith.constant 9.99999974E-6 : f32
    %14 = vector.broadcast %cst_6 : f32 to vector<16x1xf32>
    %15 = arith.addf %13, %14 : vector<16x1xf32>
    %16 = math.rsqrt %15 : vector<16x1xf32>
    %17 = vector.broadcast %16 : vector<16x1xf32> to vector<16x32xf32>
    %18 = arith.mulf %8, %17 : vector<16x32xf32>
    %c0_7 = arith.constant 0 : index
    %c0_8 = arith.constant 0 : index
    %19 = vector.load %arg3[%c0_7, %c0_8] : memref<1x32xf32, #tpu.memory_space<vmem>>, vector<1x32xf32>
    %20 = vector.broadcast %19 : vector<1x32xf32> to vector<16x32xf32>
    %21 = arith.mulf %18, %20 : vector<16x32xf32>
    %c0_9 = arith.constant 0 : index
    %c0_10 = arith.constant 0 : index
    %22 = vector.load %arg4[%c0_9, %c0_10] : memref<1x32xf32, #tpu.memory_space<vmem>>, vector<1x32xf32>
    %23 = vector.broadcast %22 : vector<1x32xf32> to vector<16x32xf32>
    %24 = arith.addf %21, %23 : vector<16x32xf32>
    %c0_11 = arith.constant 0 : index
    %c0_12 = arith.constant 0 : index
    %25 = vector.load %arg5[%c0_11, %c0_12] : memref<16x32xf32, #tpu.memory_space<vmem>>, vector<16x32xf32>
    tpu.vector_store %arg5[%c0_11, %c0_12], %24 {strides = array<i32>} : memref<16x32xf32, #tpu.memory_space<vmem>>, vector<16x32xf32>,
    return
  }
  func.func @transform_0(%arg0: i32) -> (i32, i32) {
    %c0_i32 = arith.constant 0 : i32
    %c0_i32_0 = arith.constant 0 : i32
    return %arg0, %c0_i32 : i32, i32
  }
  func.func @transform_1(%arg0: i32) -> (i32, i32) {
    %c0_i32 = arith.constant 0 : i32
    %c0_i32_0 = arith.constant 0 : i32
    return %arg0, %c0_i32 : i32, i32
  }
  func.func @transform_2(%arg0: i32) -> (i32, i32) {
    %c0_i32 = arith.constant 0 : i32
    %c0_i32_0 = arith.constant 0 : i32
    %c0_i32_1 = arith.constant 0 : i32
    return %c0_i32, %c0_i32_0 : i32, i32
  }
  func.func @transform_3(%arg0: i32) -> (i32, i32) {
    %c0_i32 = arith.constant 0 : i32
    %c0_i32_0 = arith.constant 0 : i32
    %c0_i32_1 = arith.constant 0 : i32
    return %c0_i32, %c0_i32_0 : i32, i32
  }
  func.func @transform_4(%arg0: i32) -> (i32, i32) {
    %c0_i32 = arith.constant 0 : i32
    %c0_i32_0 = arith.constant 0 : i32
    return %arg0, %c0_i32 : i32, i32
  }
}

</mosaic_0001>

<llo_original>
// kernel: block_add_norm.1
$region0: #{block_add_norm.1}
  #allocation0 [shape = 'u32[]', space=smem, size = 0x4, offset = 0x4, fixed_abs, tag = 'smem constant byte address 0x4 - core index']
  #allocation1 [shape = 'u32[144,128]{1,0:T(1,128)}', space=vmem, size = 0x12000, scoped, tag = 'internal scratch']
  %s0 = inlined_call_operand.hbm [shape: f32[16,32], index: 0, kind: input, shape index: {}]
  %s1 = inlined_call_operand.vmem [shape: f32[16,32], index: 1, kind: input, shape index: {}]
  %s2 = inlined_call_operand.vmem [shape: f32[1,32], index: 2, kind: input, shape index: {}]
  %s3 = inlined_call_operand.vmem [shape: f32[1,32], index: 3, kind: input, shape index: {}]
  %s4 = inlined_call_operand.hbm [shape: f32[16,32], index: 4, kind: output, shape index: {}]
  %s5 = sld [smem:[#allocation0]]
  $region30: #{block_add_norm.1} parent=0
    _
  %s7 = ssub.s32 1, %s5
  %s8 = scalar_select 0, %s7, %s5
  $region1: #{block_add_norm.1} parent=0
    #allocation2 [shape = 'u8[8192]{0}', space=vmem, size = 0x2000, scoped, tag = 'input window, operand 0, single buffered']
    #allocation3 [shape = 's32[1]{0}', space=sflag, size = 0x4, scoped, tag = 'scoped memory for block_add_norm.1']
    #allocation4 [shape = 's32[1]{0}', space=sflag, size = 0x4, scoped, tag = 'scoped memory for block_add_norm.1']
    #allocation5 [shape = 'u8[8192]{0}', space=vmem, size = 0x2000, scoped, tag = 'output window, operand 0, single buffered']
    %9 = vsyncpa [#allocation3], 0
    %10 = vsyncpa [#allocation4], 0
    // Predicated region
    $region2: #{block_add_norm.1} parent=1 // pred_check
      _
    $region3: #{block_add_norm.1} parent=1 // pred_check_branch
      %12 = sbr.rel (0) target = $region5
    $region4: #{block_add_norm.1} parent=1 // pred_region
      %s14 = ssub.s32 256, 256
      %15 = vsyncadd [#allocation3], %s14
      %s16 = sshll.u32 [#allocation2], 4
      %s17 = int_to_ptr.vmem [resolvable:$true] %s16
      %22 = dma.hbm_to_vmem [thread:$0]  %s0, 256, %s17, [#allocation3], 128, 128, 8
    $region5: #{block_add_norm.1} parent=1 // pred_fallthru
      _
    // Predicated region
    $region6: #{block_add_norm.1} parent=1 // pred_check
      _
    $region7: #{block_add_norm.1} parent=1 // pred_check_branch
      %24 = sbr.rel (0) target = $region9
    $region8: #{block_add_norm.1} parent=1 // pred_region
      _
    $region9: #{block_add_norm.1} parent=1 // pred_fallthru
      _
    // Predicated region
    $region10: #{block_add_norm.1} parent=1 // pred_check
      _
    $region11: #{block_add_norm.1} parent=1 // pred_check_branch
      %26 = sbr.rel (0) target = $region13
    $region12: #{block_add_norm.1} parent=1 // pred_region
      _
    $region13: #{block_add_norm.1} parent=1 // pred_fallthru
      _
    // Predicated region
    $region14: #{block_add_norm.1} parent=1 // pred_check
      _
    $region15: #{block_add_norm.1} parent=1 // pred_check_branch
      %28 = sbr.rel (0) target = $region17
    $region16: #{block_add_norm.1} parent=1 // pred_region
      _
    $region17: #{block_add_norm.1} parent=1 // pred_fallthru
      _
    // Predicated region
    $region18: #{block_add_norm.1} parent=1 // pred_check
      _
    $region19: #{block_add_norm.1} parent=1 // pred_check_branch
      %30 = sbr.rel (0) target = $region21
    $region20: #{block_add_norm.1} parent=1 // pred_region
      %31 = dma.done [#allocation3], 256
    $region21: #{block_add_norm.1} parent=1 // pred_fallthru
      _
    %v32 = vld [vmem:[%s1] sm:$0xff]
    %v33 = vld [vmem:[%s1 + $0x8] sm:$0xff]
    %v34 = vld [vmem:[#allocation2] sm:$0xff]
    %v35 = vld [vmem:[#allocation2 + $0x8] sm:$0xff]
    %v36 = vadd.f32 %v32, %v34
    %v37 = vadd.f32 %v33, %v35
    %vm38 = vcmask 261120
    %v39 = vsel %vm38, %v36, 0.0
    %40 = vadd.xlane.f32.xlu0 %v39
    %v41 = vpop.xlane.xlu0 %40
    %v42 = vsel %vm38, %v37, 0.0
    %43 = vadd.xlane.f32.xlu0 %v42
    %v44 = vpop.xlane.xlu0 %43
    %v45 = vmul.f32 %v41, 0.03125
    %v46 = vmul.f32 %v44, 0.03125
    %v47 = vsub.f32 %v36, %v45
    %v48 = vsub.f32 %v37, %v46
    %v49 = vmul.f32 %v47, %v47
    %v50 = vmul.f32 %v48, %v48
    %v51 = vsel %vm38, %v49, 0.0
    %52 = vadd.xlane.f32.xlu0 %v51
    %v53 = vpop.xlane.xlu0 %52
    %v54 = vsel %vm38, %v50, 0.0
    %55 = vadd.xlane.f32.xlu0 %v54
    %v56 = vpop.xlane.xlu0 %55
    %v57 = vmul.f32 %v53, 0.03125
    %v58 = vmul.f32 %v56, 0.03125
    %v59 = vadd.f32 %v57, 1e-05
    %v60 = vadd.f32 %v58, 1e-05
    %v61 = vrsqrt.pop %v59
    %v62 = vrsqrt.pop %v60
    %v63 = vmul.f32 %v47, %v61
    %v64 = vmul.f32 %v48, %v62
    %v65 = vld [vmem:[%s2] sm:$0x1]
    %v67 = vlaneseq
    %v68 = vshrl.u32 %v67, 7
    %v69 = vsub.s32 0, %v68
    %v70 = vrot.slane %v65, %v69
    %v72 = vmul.f32 %v63, %v70
    %v73 = vmul.f32 %v64, %v70
    %v74 = vld [vmem:[%s3] sm:$0x1]
    %v76 = vlaneseq
    %v77 = vshrl.u32 %v76, 7
    %v78 = vsub.s32 0, %v77
    %v79 = vrot.slane %v74, %v78
    %v81 = vadd.f32 %v72, %v79
    %v82 = vadd.f32 %v73, %v79
    %83 = vst.msk [vmem:[#allocation5] sm:$0xff] %vm38, %v81
    %84 = vst.msk [vmem:[#allocation5 + $0x8] sm:$0xff] %vm38, %v82
    // Predicated region
    $region22: #{block_add_norm.1} parent=1 // pred_check
      _
    $region23: #{block_add_norm.1} parent=1 // pred_check_branch
      %86 = sbr.rel (0) target = $region25
    $region24: #{block_add_norm.1} parent=1 // pred_region
      %s88 = ssub.s32 256, 256
      %89 = vsyncadd [#allocation4], %s88
      %s90 = sshll.u32 [#allocation5], 4
      %s91 = int_to_ptr.vmem [resolvable:$true] %s90
      %96 = dma.vmem_to_hbm [thread:$0]  %s91, 256, %s4, [#allocation4], 128, 128, 8
    $region25: #{block_add_norm.1} parent=1 // pred_fallthru
      _
    // Predicated region
    $region26: #{block_add_norm.1} parent=1 // pred_check
      _
    $region27: #{block_add_norm.1} parent=1 // pred_check_branch
      %98 = sbr.rel (0) target = $region29
    $region28: #{block_add_norm.1} parent=1 // pred_region
      %99 = dma.done [#allocation4], 256
    $region29: #{block_add_norm.1} parent=1 // pred_fallthru
      _
    %100 = vsyncpa [#allocation3], 1
    %101 = vsyncpa [#allocation4], 1

</llo_original>
